<compile_context>
chip_gen: v7x
topology: tpu7x:2x2x1
jax: 0.10.0
libtpu: 0.0.40
codegen_flags: <defaults>
</compile_context>

<pallas_src>
import functools

import jax
import jax.numpy as jnp
import numpy as np
from jax.experimental import pallas as pl
from jax.experimental.pallas import tpu as pltpu


LANE = 128


def _round_up(x, m):
    return (x + m - 1) // m * m


# ----------------------------- Pallas kernel ------------------------------

def _conv_bias_ln_kernel(x_ref, w_ref, b_ref, g_ref, beta_ref, o_ref, *, c_true, eps):
    """One M-tile of: (im2col rows) @ W + b, then LayerNorm over the true C cols.

    x_ref:    (tm, Kp)   f32   im2col rows (zero-padded in K)
    w_ref:    (Kp, Np)   f32   conv weight as matmul RHS (zero-padded in K and N)
    b_ref:    (1,  Np)   f32   conv bias (zero-padded)
    g_ref:    (1,  Np)   f32   LN gamma (zero-padded)
    beta_ref: (1,  Np)   f32   LN beta  (zero-padded)
    o_ref:    (tm, Np)   f32   output (padded N cols are exactly zero)
    """
    # MXU matmul: bf16 operands, f32 accumulation.
    acc = jnp.dot(
        x_ref[...].astype(jnp.bfloat16),
        w_ref[...].astype(jnp.bfloat16),
        preferred_element_type=jnp.float32,
    )
    acc = acc + b_ref[...]  # padded cols: zero weight + zero bias -> exactly 0

    # LayerNorm over the true embedding dim only (padded lanes are zero, so
    # plain sums are correct for the mean; mask the deviation for the variance).
    inv_c = jnp.float32(1.0 / c_true)
    mean = jnp.sum(acc, axis=-1, keepdims=True) * inv_c
    lane = jax.lax.broadcasted_iota(jnp.int32, acc.shape, dimension=1)
    diff = jnp.where(lane < c_true, acc - mean, 0.0)
    var = jnp.sum(diff * diff, axis=-1, keepdims=True) * inv_c
    y = diff * jax.lax.rsqrt(var + eps)
    # gamma/beta are zero on padded lanes -> padded output lanes stay 0.
    o_ref[...] = (y * g_ref[...] + beta_ref[...]).astype(o_ref.dtype)


# ------------------------------- JAX glue -----------------------------------

def _im2col(x_nchw, ksize, stride, pad):
    """NCHW conv -> (B*Ho*Wo, Cin*k*k) columns with (cin, kh, kw) minor ordering
    (matches flattening the PyTorch conv weight (Cout, Cin, kh, kw))."""
    B, C, Hin, Win = x_nchw.shape
    Ho = (Hin + 2 * pad - ksize) // stride + 1
    Wo = (Win + 2 * pad - ksize) // stride + 1
    xp = jnp.pad(x_nchw, ((0, 0), (0, 0), (pad, pad), (pad, pad)))
    cols = []
    for kh in range(ksize):
        for kw in range(ksize):
            cols.append(xp[:, :,
                           kh:kh + stride * (Ho - 1) + 1:stride,
                           kw:kw + stride * (Wo - 1) + 1:stride])
    col = jnp.stack(cols, axis=2)                       # (B, C, k*k, Ho, Wo)
    col = col.transpose(0, 3, 4, 1, 2)                  # (B, Ho, Wo, C, k*k)
    col = col.reshape(B * Ho * Wo, C * ksize * ksize)
    return col, Ho, Wo


def patch_embedding(x_nchw, conv_w, conv_b, ln_g, ln_b, *, patch_size, stride,
                    eps=1e-5):
    """PyTorch PatchEmbedding.forward: Conv2d(k, s, p=k//2) -> (B, H*W, C) -> LN.

    Returns (x, H, W) with x: (B, H*W, embed_dim) float32.
    """
    B, Cin, Hin, Win = x_nchw.shape
    Cout = conv_w.shape[0]
    pad = patch_size // 2
    K = Cin * patch_size * patch_size

    col, Ho, Wo = _im2col(x_nchw, patch_size, stride, pad)   # (M, K)
    M = col.shape[0]
    w2 = conv_w.reshape(Cout, K).T                           # (K, Cout)

    # Lane-dense padding (multiples of 128) for LHS K and output N.
    Kp = _round_up(K, LANE)
    Np = _round_up(Cout, LANE)

    # Row tiling: biggest tile that keeps VMEM small and pipelines on real shapes
    # (tm=512 rows * Np f32 ~ 256 KiB/Np=128 per buffer; well under v7x's 64 MiB).
    tm = min(512, _round_up(M, 8))
    Mp = _round_up(M, tm)

    col_p = jnp.zeros((Mp, Kp), jnp.float32).at[:M, :K].set(col)
    w_p = jnp.zeros((Kp, Np), jnp.float32).at[:K, :Cout].set(w2)
    b_p = jnp.zeros((1, Np), jnp.float32).at[0, :Cout].set(conv_b)
    g_p = jnp.zeros((1, Np), jnp.float32).at[0, :Cout].set(ln_g)
    beta_p = jnp.zeros((1, Np), jnp.float32).at[0, :Cout].set(ln_b)

    grid = (Mp // tm,)
    out = pl.pallas_call(
        functools.partial(_conv_bias_ln_kernel, c_true=Cout, eps=eps),
        out_shape=jax.ShapeDtypeStruct((Mp, Np), jnp.float32),
        grid=grid,
        in_specs=[
            pl.BlockSpec((tm, Kp), lambda i: (i, 0)),   # im2col row tile
            pl.BlockSpec((Kp, Np), lambda i: (0, 0)),   # weight resident across grid
            pl.BlockSpec((1, Np), lambda i: (0, 0)),    # bias
            pl.BlockSpec((1, Np), lambda i: (0, 0)),    # LN gamma
            pl.BlockSpec((1, Np), lambda i: (0, 0)),    # LN beta
        ],
        out_specs=pl.BlockSpec((tm, Np), lambda i: (i, 0)),
        compiler_params=pltpu.CompilerParams(
            dimension_semantics=("parallel",),          # megacore / 2-TC sharding
        ),
    )(col_p, w_p, b_p, g_p, beta_p)

    y = out[:M, :Cout].reshape(B, Ho * Wo, Cout)
    return y, Ho, Wo


# --------------------------- pure-JAX reference ------------------------------

def _reference(x_nchw, conv_w, conv_b, ln_g, ln_b, *, patch_size, stride, eps=1e-5):
    pad = patch_size // 2
    y = jax.lax.conv_general_dilated(
        x_nchw, conv_w, window_strides=(stride, stride),
        padding=[(pad, pad), (pad, pad)],
        dimension_numbers=("NCHW", "OIHW", "NCHW"),
    ) + conv_b[None, :, None, None]
    B, C, H, W = y.shape
    y = y.transpose(0, 2, 3, 1).reshape(B, H * W, C)        # b c h w -> b (h w) c
    mean = jnp.mean(y, axis=-1, keepdims=True)
    var = jnp.mean(jnp.square(y - mean), axis=-1, keepdims=True)
    y = (y - mean) * jax.lax.rsqrt(var + eps) * ln_g + ln_b
    return y, H, W


# --------------------------------- main --------------------------------------

if __name__ == "__main__":
    key = jax.random.PRNGKey(0)
    kx, kw, kb = jax.random.split(key, 3)

    B, Cin, Hin, Win = 2, 4, 16, 16
    patch_size, stride, embed_dim = 3, 2, 32

    x = jax.random.normal(kx, (B, Cin, Hin, Win), jnp.float32)
    conv_w = 0.02 * jax.random.normal(kw, (embed_dim, Cin, patch_size, patch_size),
                                      jnp.float32)
    conv_b = 0.01 * jax.random.normal(kb, (embed_dim,), jnp.float32)
    ln_g = jnp.ones((embed_dim,), jnp.float32)
    ln_b = jnp.zeros((embed_dim,), jnp.float32)

    y, H, W = patch_embedding(x, conv_w, conv_b, ln_g, ln_b,
                              patch_size=patch_size, stride=stride)
    y = jax.block_until_ready(y)

    assert (H, W) == (8, 8), (H, W)
    assert y.shape == (B, H * W, embed_dim), y.shape
    assert bool(jnp.all(jnp.isfinite(y)))

    y_ref, H_ref, W_ref = _reference(x, conv_w, conv_b, ln_g, ln_b,
                                     patch_size=patch_size, stride=stride)
    assert (H_ref, W_ref) == (H, W)
    # bf16 MXU operands with f32 accumulation -> loose tolerance vs f32 reference.
    np.testing.assert_allclose(np.asarray(y), np.asarray(y_ref),
                               atol=3e-2, rtol=3e-2)

    print("KERNEL_OK")
</pallas_src>

<mosaic_0001>
module attributes {stable_mosaic.version = 11 : i64} {
  func.func @_conv_bias_ln_kernel(%arg0: i32, %arg1: memref<128x128xf32, #tpu.memory_space<vmem>>, %arg2: memref<128x128xf32, #tpu.memory_space<vmem>>, %arg3: memref<1x128xf32, #tpu.memory_space<vmem>>, %arg4: memref<1x128xf32, #tpu.memory_space<vmem>>, %arg5: memref<1x128xf32, #tpu.memory_space<vmem>>, %arg6: memref<128x128xf32, #tpu.memory_space<vmem>>) attributes {dimension_semantics = [#tpu.dimension_semantics<parallel>], iteration_bounds = array<i64: 1>, scalar_prefetch = 0 : i64, scratch_operands = 0 : i64, tpu.core_type = #tpu.core_type<tc>, window_params = [{transform_indices = @transform_0, window_bounds = array<i64: 128, 128>}, {pipeline_mode = #tpu.pipeline_mode<synchronous>, transform_indices = @transform_1, window_bounds = array<i64: 128, 128>}, {pipeline_mode = #tpu.pipeline_mode<synchronous>, transform_indices = @transform_2, window_bounds = array<i64: 1, 128>}, {pipeline_mode = #tpu.pipeline_mode<synchronous>, transform_indices = @transform_3, window_bounds = array<i64: 1, 128>}, {pipeline_mode = #tpu.pipeline_mode<synchronous>, transform_indices = @transform_4, window_bounds = array<i64: 1, 128>}, {transform_indices = @transform_5, window_bounds = array<i64: 128, 128>}]} {
    %c0 = arith.constant 0 : index
    %c0_0 = arith.constant 0 : index
    %0 = vector.load %arg1[%c0, %c0_0] : memref<128x128xf32, #tpu.memory_space<vmem>>, vector<128x128xf32>
    %1 = arith.truncf %0 : vector<128x128xf32> to vector<128x128xbf16>
    %c0_1 = arith.constant 0 : index
    %c0_2 = arith.constant 0 : index
    %2 = vector.load %arg2[%c0_1, %c0_2] : memref<128x128xf32, #tpu.memory_space<vmem>>, vector<128x128xf32>
    %3 = arith.truncf %2 : vector<128x128xf32> to vector<128x128xbf16>
    %cst = arith.constant dense<0.000000e+00> : vector<128x128xf32>
    %4 = tpu.matmul %1, %3, %cst {dimension_numbers = #tpu.dot_dimension_numbers<[1], [0], [0], [1], [0, 0, 1, 1], [], []>} : vector<128x128xbf16>, vector<128x128xbf16>, vector<128x128xf32> -> vector<128x128xf32>
    %c0_3 = arith.constant 0 : index
    %c0_4 = arith.constant 0 : index
    %5 = vector.load %arg3[%c0_3, %c0_4] : memref<1x128xf32, #tpu.memory_space<vmem>>, vector<1x128xf32>
    %6 = vector.broadcast %5 : vector<1x128xf32> to vector<128x128xf32>
    %7 = arith.addf %4, %6 : vector<128x128xf32>
    %cst_5 = arith.constant dense<0.000000e+00> : vector<128xf32>
    %8 = vector.multi_reduction <add>, %7, %cst_5 [1] : vector<128x128xf32> to vector<128xf32>
    %9 = vector.shape_cast %8 : vector<128xf32> to vector<128x1xf32>
    %cst_6 = arith.constant 3.125000e-02 : f32
    %10 = vector.broadcast %cst_6 : f32 to vector<128x1xf32>
    %11 = arith.mulf %9, %10 : vector<128x1xf32>
    %12 = tpu.iota {dimensions = array<i32: 1>} : vector<128x128xi32>
    %c32_i32 = arith.constant 32 : i32
    %13 = vector.broadcast %c32_i32 : i32 to vector<128x128xi32>
    %14 = arith.cmpi slt, %12, %13 : vector<128x128xi32>
    %15 = vector.broadcast %11 : vector<128x1xf32> to vector<128x128xf32>
    %16 = arith.subf %7, %15 : vector<128x128xf32>
    %cst_7 = arith.constant 0.000000e+00 : f32
    %17 = vector.broadcast %cst_7 : f32 to vector<128x128xf32>
    %18 = arith.select %14, %16, %17 : vector<128x128xi1>, vector<128x128xf32>
    %19 = arith.mulf %18, %18 : vector<128x128xf32>
    %cst_8 = arith.constant dense<0.000000e+00> : vector<128xf32>
    %20 = vector.multi_reduction <add>, %19, %cst_8 [1] : vector<128x128xf32> to vector<128xf32>
    %21 = vector.shape_cast %20 : vector<128xf32> to vector<128x1xf32>
    %cst_9 = arith.constant 3.125000e-02 : f32
    %22 = vector.broadcast %cst_9 : f32 to vector<128x1xf32>
    %23 = arith.mulf %21, %22 : vector<128x1xf32>
    %cst_10 = arith.constant 9.99999974E-6 : f32
    %24 = vector.broadcast %cst_10 : f32 to vector<128x1xf32>
    %25 = arith.addf %23, %24 : vector<128x1xf32>
    %26 = math.rsqrt %25 : vector<128x1xf32>
    %27 = vector.broadcast %26 : vector<128x1xf32> to vector<128x128xf32>
    %28 = arith.mulf %18, %27 : vector<128x128xf32>
    %c0_11 = arith.constant 0 : index
    %c0_12 = arith.constant 0 : index
    %29 = vector.load %arg4[%c0_11, %c0_12] : memref<1x128xf32, #tpu.memory_space<vmem>>, vector<1x128xf32>
    %30 = vector.broadcast %29 : vector<1x128xf32> to vector<128x128xf32>
    %31 = arith.mulf %28, %30 : vector<128x128xf32>
    %c0_13 = arith.constant 0 : index
    %c0_14 = arith.constant 0 : index
    %32 = vector.load %arg5[%c0_13, %c0_14] : memref<1x128xf32, #tpu.memory_space<vmem>>, vector<1x128xf32>
    %33 = vector.broadcast %32 : vector<1x128xf32> to vector<128x128xf32>
    %34 = arith.addf %31, %33 : vector<128x128xf32>
    %c0_15 = arith.constant 0 : index
    %c0_16 = arith.constant 0 : index
    %35 = vector.load %arg6[%c0_15, %c0_16] : memref<128x128xf32, #tpu.memory_space<vmem>>, vector<128x128xf32>
    tpu.vector_store %arg6[%c0_15, %c0_16], %34 {strides = array<i32>} : memref<128x128xf32, #tpu.memory_space<vmem>>, vector<128x128xf32>,
    return
  }
  func.func @transform_0(%arg0: i32) -> (i32, i32) {
    %c0_i32 = arith.constant 0 : i32
    %c0_i32_0 = arith.constant 0 : i32
    return %arg0, %c0_i32 : i32, i32
  }
  func.func @transform_1(%arg0: i32) -> (i32, i32) {
    %c0_i32 = arith.constant 0 : i32
    %c0_i32_0 = arith.constant 0 : i32
    %c0_i32_1 = arith.constant 0 : i32
    return %c0_i32, %c0_i32_0 : i32, i32
  }
  func.func @transform_2(%arg0: i32) -> (i32, i32) {
    %c0_i32 = arith.constant 0 : i32
    %c0_i32_0 = arith.constant 0 : i32
    %c0_i32_1 = arith.constant 0 : i32
    return %c0_i32, %c0_i32_0 : i32, i32
  }
  func.func @transform_3(%arg0: i32) -> (i32, i32) {
    %c0_i32 = arith.constant 0 : i32
    %c0_i32_0 = arith.constant 0 : i32
    %c0_i32_1 = arith.constant 0 : i32
    return %c0_i32, %c0_i32_0 : i32, i32
  }
  func.func @transform_4(%arg0: i32) -> (i32, i32) {
    %c0_i32 = arith.constant 0 : i32
    %c0_i32_0 = arith.constant 0 : i32
    %c0_i32_1 = arith.constant 0 : i32
    return %c0_i32, %c0_i32_0 : i32, i32
  }
  func.func @transform_5(%arg0: i32) -> (i32, i32) {
    %c0_i32 = arith.constant 0 : i32
    %c0_i32_0 = arith.constant 0 : i32
    return %arg0, %c0_i32 : i32, i32
  }
}

</mosaic_0001>

<llo_original>
// kernel: tpu_custom_call.1
$region0: #{tpu_custom_call.1}
  #allocation0 [shape = 'u32[]', space=smem, size = 0x4, offset = 0x4, fixed_abs, tag = 'smem constant byte address 0x4 - core index']
  #allocation1 [shape = 'u32[144,128]{1,0:T(1,128)}', space=vmem, size = 0x12000, scoped, tag = 'internal scratch']
  %s0 = inlined_call_operand.hbm [shape: f32[128,128], index: 0, kind: input, shape index: {}]
  %s1 = inlined_call_operand.hbm [shape: f32[128,128], index: 1, kind: input, shape index: {}]
  %s2 = inlined_call_operand.vmem [shape: f32[1,128], index: 2, kind: input, shape index: {}]
  %s3 = inlined_call_operand.vmem [shape: f32[1,128], index: 3, kind: input, shape index: {}]
  %s4 = inlined_call_operand.vmem [shape: f32[1,128], index: 4, kind: input, shape index: {}]
  %s5 = inlined_call_operand.hbm [shape: f32[128,128], index: 5, kind: output, shape index: {}]
  %s6 = sld [smem:[#allocation0]]
  $region38: #{tpu_custom_call.1} parent=0
    _
  %s8 = ssub.s32 1, %s6
  %s9 = scalar_select 0, %s8, %s6
  $region1: #{tpu_custom_call.1} parent=0
    #allocation2 [shape = 'u8[65536]{0}', space=vmem, size = 0x10000, scoped, tag = 'input window, operand 0, single buffered']
    #allocation3 [shape = 's32[1]{0}', space=sflag, size = 0x4, scoped, tag = 'scoped memory for tpu_custom_call.1']
    #allocation4 [shape = 's32[1]{0}', space=sflag, size = 0x4, scoped, tag = 'scoped memory for tpu_custom_call.1']
    #allocation5 [shape = 'u8[65536]{0}', space=vmem, size = 0x10000, scoped, tag = 'input window, operand 1, single buffered']
    #allocation6 [shape = 's32[1]{0}', space=sflag, size = 0x4, scoped, tag = 'scoped memory for tpu_custom_call.1']
    #allocation7 [shape = 'u8[65536]{0}', space=vmem, size = 0x10000, scoped, tag = 'output window, operand 0, single buffered']
    %10 = vsyncpa [#allocation3], 0
    %11 = vsyncpa [#allocation6], 0
    %12 = vsyncpa [#allocation4], 0
    // Predicated region
    $region2: #{tpu_custom_call.1} parent=1 // pred_check
      _
    $region3: #{tpu_custom_call.1} parent=1 // pred_check_branch
      %14 = sbr.rel (0) target = $region5
    $region4: #{tpu_custom_call.1} parent=1 // pred_region
      %s16 = ssub.s32 2048, 2048
      %17 = vsyncadd [#allocation3], %s16
      %s18 = sshll.u32 [#allocation2], 4
      %s19 = int_to_ptr.vmem [resolvable:$true] %s18
      %24 = dma.hbm_to_vmem [thread:$0]  %s0, 2048, %s19, [#allocation3], 128, 128, 8
    $region5: #{tpu_custom_call.1} parent=1 // pred_fallthru
      _
    // Predicated region
    $region6: #{tpu_custom_call.1} parent=1 // pred_check
      _
    $region7: #{tpu_custom_call.1} parent=1 // pred_check_branch
      %26 = sbr.rel (0) target = $region9
    $region8: #{tpu_custom_call.1} parent=1 // pred_region
      %s28 = ssub.s32 2048, 2048
      %29 = vsyncadd [#allocation6], %s28
      %s30 = sshll.u32 [#allocation5], 4
      %s31 = int_to_ptr.vmem [resolvable:$true] %s30
      %36 = dma.hbm_to_vmem [thread:$0]  %s1, 2048, %s31, [#allocation6], 128, 128, 8
    $region9: #{tpu_custom_call.1} parent=1 // pred_fallthru
      _
    // Predicated region
    $region10: #{tpu_custom_call.1} parent=1 // pred_check
      _
    $region11: #{tpu_custom_call.1} parent=1 // pred_check_branch
      %38 = sbr.rel (0) target = $region13
    $region12: #{tpu_custom_call.1} parent=1 // pred_region
      _
    $region13: #{tpu_custom_call.1} parent=1 // pred_fallthru
      _
    // Predicated region
    $region14: #{tpu_custom_call.1} parent=1 // pred_check
      _
    $region15: #{tpu_custom_call.1} parent=1 // pred_check_branch
      %40 = sbr.rel (0) target = $region17
    $region16: #{tpu_custom_call.1} parent=1 // pred_region
      _
    $region17: #{tpu_custom_call.1} parent=1 // pred_fallthru
      _
    // Predicated region
    $region18: #{tpu_custom_call.1} parent=1 // pred_check
      _
    $region19: #{tpu_custom_call.1} parent=1 // pred_check_branch
      %42 = sbr.rel (0) target = $region21
    $region20: #{tpu_custom_call.1} parent=1 // pred_region
      _
    $region21: #{tpu_custom_call.1} parent=1 // pred_fallthru
      _
    // Predicated region
    $region22: #{tpu_custom_call.1} parent=1 // pred_check
      _
    $region23: #{tpu_custom_call.1} parent=1 // pred_check_branch
      %44 = sbr.rel (0) target = $region25
    $region24: #{tpu_custom_call.1} parent=1 // pred_region
      %45 = dma.done [#allocation3], 2048
    $region25: #{tpu_custom_call.1} parent=1 // pred_fallthru
      _
    // Predicated region
    $region26: #{tpu_custom_call.1} parent=1 // pred_check
      _
    $region27: #{tpu_custom_call.1} parent=1 // pred_check_branch
      %47 = sbr.rel (0) target = $region29
    $region28: #{tpu_custom_call.1} parent=1 // pred_region
      %48 = dma.done [#allocation6], 2048
    $region29: #{tpu_custom_call.1} parent=1 // pred_fallthru
      _
    %v50 = vld [vmem:[#allocation2] sm:$0xff]
    %v51 = vld [vmem:[#allocation2 + $0x8] sm:$0xff]
    %v52 = vld [vmem:[#allocation2 + $0x10] sm:$0xff]
    %v53 = vld [vmem:[#allocation2 + $0x18] sm:$0xff]
    %v54 = vld [vmem:[#allocation2 + $0x20] sm:$0xff]
    %v55 = vld [vmem:[#allocation2 + $0x28] sm:$0xff]
    %v56 = vld [vmem:[#allocation2 + $0x30] sm:$0xff]
    %v57 = vld [vmem:[#allocation2 + $0x38] sm:$0xff]
    %v58 = vld [vmem:[#allocation2 + $0x40] sm:$0xff]
    %v59 = vld [vmem:[#allocation2 + $0x48] sm:$0xff]
    %v60 = vld [vmem:[#allocation2 + $0x50] sm:$0xff]
    %v61 = vld [vmem:[#allocation2 + $0x58] sm:$0xff]
    %v62 = vld [vmem:[#allocation2 + $0x60] sm:$0xff]
    %v63 = vld [vmem:[#allocation2 + $0x68] sm:$0xff]
    %v64 = vld [vmem:[#allocation2 + $0x70] sm:$0xff]
    %v65 = vld [vmem:[#allocation2 + $0x78] sm:$0xff]
    %v66 = vpack.c.bf16 %v51, %v50
    %v67 = vpack.c.bf16 %v53, %v52
    %v68 = vpack.c.bf16 %v55, %v54
    %v69 = vpack.c.bf16 %v57, %v56
    %v70 = vpack.c.bf16 %v59, %v58
    %v71 = vpack.c.bf16 %v61, %v60
    %v72 = vpack.c.bf16 %v63, %v62
    %v73 = vpack.c.bf16 %v65, %v64
    %v74 = vld [vmem:[#allocation5] sm:$0xff]
    %v75 = vld [vmem:[#allocation5 + $0x8] sm:$0xff]
    %v76 = vld [vmem:[#allocation5 + $0x10] sm:$0xff]
    %v77 = vld [vmem:[#allocation5 + $0x18] sm:$0xff]
    %v78 = vld [vmem:[#allocation5 + $0x20] sm:$0xff]
    %v79 = vld [vmem:[#allocation5 + $0x28] sm:$0xff]
    %v80 = vld [vmem:[#allocation5 + $0x30] sm:$0xff]
    %v81 = vld [vmem:[#allocation5 + $0x38] sm:$0xff]
    %v82 = vld [vmem:[#allocation5 + $0x40] sm:$0xff]
    %v83 = vld [vmem:[#allocation5 + $0x48] sm:$0xff]
    %v84 = vld [vmem:[#allocation5 + $0x50] sm:$0xff]
    %v85 = vld [vmem:[#allocation5 + $0x58] sm:$0xff]
    %v86 = vld [vmem:[#allocation5 + $0x60] sm:$0xff]
    %v87 = vld [vmem:[#allocation5 + $0x68] sm:$0xff]
    %v88 = vld [vmem:[#allocation5 + $0x70] sm:$0xff]
    %v89 = vld [vmem:[#allocation5 + $0x78] sm:$0xff]
    %v90 = vpack.c.bf16 %v75, %v74
    %v91 = vpack.c.bf16 %v77, %v76
    %v92 = vpack.c.bf16 %v79, %v78
    %v93 = vpack.c.bf16 %v81, %v80
    %v94 = vpack.c.bf16 %v83, %v82
    %v95 = vpack.c.bf16 %v85, %v84
    %v96 = vpack.c.bf16 %v87, %v86
    %v97 = vpack.c.bf16 %v89, %v88
    %v98 = vld [vmem:[%s2] sm:$0x1]
    %v100 = vlaneseq
    %v101 = vshrl.u32 %v100, 7
    %v102 = vsub.s32 0, %v101
    %v103 = vrot.slane %v98, %v102
    %105 = vmatprep.subr.bf16.mxu0 0
    %106 = vmatpush1.bf16.msra.mxu0 %v90
    %107 = vmatprep.subr.bf16.mxu0 0
    %108 = vmatpush1.bf16.msra.mxu0 %v91
    %109 = vmatprep.subr.bf16.mxu0 0
    %110 = vmatpush1.bf16.msra.mxu0 %v92
    %111 = vmatprep.subr.bf16.mxu0 0
    %112 = vmatpush1.bf16.msra.mxu0 %v93
    %113 = vmatprep.subr.bf16.mxu0 0
    %114 = vmatpush1.bf16.msra.mxu0 %v94
    %115 = vmatprep.subr.bf16.mxu0 0
    %116 = vmatpush1.bf16.msra.mxu0 %v95
    %117 = vmatprep.subr.bf16.mxu0 0
    %118 = vmatpush1.bf16.msra.mxu0 %v96
    %119 = vmatprep.subr.bf16.mxu0 0
    %120 = vmatpush1.bf16.msra.mxu0 %v97
    %121 = vmatprep.subr.bf16.mxu0 0
    %122 = vmatpush1.bf16.msra.mxu0 0
    %123 = vmatprep.subr.bf16.mxu0 0
    %124 = vmatpush1.bf16.msra.mxu0 0
    %125 = vmatprep.subr.bf16.mxu0 0
    %126 = vmatpush1.bf16.msra.mxu0 0
    %127 = vmatprep.subr.bf16.mxu0 0
    %128 = vmatpush1.bf16.msra.mxu0 0
    %129 = vmatprep.subr.bf16.mxu0 0
    %130 = vmatpush1.bf16.msra.mxu0 0
    %131 = vmatprep.subr.bf16.mxu0 0
    %132 = vmatpush1.bf16.msra.mxu0 0
    %133 = vmatprep.subr.bf16.mxu0 0
    %134 = vmatpush1.bf16.msra.mxu0 0
    %135 = vmatprep.subr.bf16.mxu0 0
    %136 = vmatpush1.bf16.msra.mxu0 0
    %137 = vmatprep.mubr.bf16.mxu0 0
    %138 = vmatmul.mubr.bf16.gmra.mrb[0].mxu0 %v66
    %v139 = vpop.f32.mrb[0].mxu0
    %v140 = vadd.f32 %v103, %v139
    %v141 = vpop.f32.mrb[0].mxu0
    %v142 = vpop.f32.mrb[0].mxu0
    %v143 = vadd.f32 %v103, %v142
    %v144 = vpop.f32.mrb[0].mxu0
    %145 = vmatprep.mubr.bf16.mxu0 0
    %146 = vmatmul.mubr.bf16.gmra.mrb[0].mxu0 %v67
    %v147 = vpop.f32.mrb[0].mxu0
    %v148 = vadd.f32 %v103, %v147
    %v149 = vpop.f32.mrb[0].mxu0
    %v150 = vpop.f32.mrb[0].mxu0
    %v151 = vadd.f32 %v103, %v150
    %v152 = vpop.f32.mrb[0].mxu0
    %153 = vmatprep.mubr.bf16.mxu0 0
    %154 = vmatmul.mubr.bf16.gmra.mrb[0].mxu0 %v68
    %v155 = vpop.f32.mrb[0].mxu0
    %v156 = vadd.f32 %v103, %v155
    %v157 = vpop.f32.mrb[0].mxu0
    %v158 = vpop.f32.mrb[0].mxu0
    %v159 = vadd.f32 %v103, %v158
    %v160 = vpop.f32.mrb[0].mxu0
    %161 = vmatprep.mubr.bf16.mxu0 0
    %162 = vmatmul.mubr.bf16.gmra.mrb[0].mxu0 %v69
    %v163 = vpop.f32.mrb[0].mxu0
    %v164 = vadd.f32 %v103, %v163
    %v165 = vpop.f32.mrb[0].mxu0
    %v166 = vpop.f32.mrb[0].mxu0
    %v167 = vadd.f32 %v103, %v166
    %v168 = vpop.f32.mrb[0].mxu0
    %169 = vmatprep.mubr.bf16.mxu0 0
    %170 = vmatmul.mubr.bf16.gmra.mrb[0].mxu0 %v70
    %v171 = vpop.f32.mrb[0].mxu0
    %v172 = vadd.f32 %v103, %v171
    %v173 = vpop.f32.mrb[0].mxu0
    %v174 = vpop.f32.mrb[0].mxu0
    %v175 = vadd.f32 %v103, %v174
    %v176 = vpop.f32.mrb[0].mxu0
    %177 = vmatprep.mubr.bf16.mxu0 0
    %178 = vmatmul.mubr.bf16.gmra.mrb[0].mxu0 %v71
    %v179 = vpop.f32.mrb[0].mxu0
    %v180 = vadd.f32 %v103, %v179
    %v181 = vpop.f32.mrb[0].mxu0
    %v182 = vpop.f32.mrb[0].mxu0
    %v183 = vadd.f32 %v103, %v182
    %v184 = vpop.f32.mrb[0].mxu0
    %185 = vmatprep.mubr.bf16.mxu0 0
    %186 = vmatmul.mubr.bf16.gmra.mrb[0].mxu0 %v72
    %v187 = vpop.f32.mrb[0].mxu0
    %v188 = vadd.f32 %v103, %v187
    %v189 = vpop.f32.mrb[0].mxu0
    %v190 = vpop.f32.mrb[0].mxu0
    %v191 = vadd.f32 %v103, %v190
    %v192 = vpop.f32.mrb[0].mxu0
    %193 = vmatprep.mubr.bf16.mxu0 0
    %194 = vmatmul.mubr.bf16.gmra.mrb[0].mxu0 %v73
    %v195 = vpop.f32.mrb[0].mxu0
    %v196 = vadd.f32 %v103, %v195
    %v197 = vpop.f32.mrb[0].mxu0
    %v198 = vpop.f32.mrb[0].mxu0
    %v199 = vadd.f32 %v103, %v198
    %v200 = vpop.f32.mrb[0].mxu0
    %201 = vdwg.mxu0
    %202 = vadd.xlane.f32.xlu0 %v140
    %v203 = vpop.xlane.xlu0 %202
    %204 = vadd.xlane.f32.xlu0 %v143
    %v205 = vpop.xlane.xlu0 %204
    %206 = vadd.xlane.f32.xlu0 %v148
    %v207 = vpop.xlane.xlu0 %206
    %208 = vadd.xlane.f32.xlu0 %v151
    %v209 = vpop.xlane.xlu0 %208
    %210 = vadd.xlane.f32.xlu0 %v156
    %v211 = vpop.xlane.xlu0 %210
    %212 = vadd.xlane.f32.xlu0 %v159
    %v213 = vpop.xlane.xlu0 %212
    %214 = vadd.xlane.f32.xlu0 %v164
    %v215 = vpop.xlane.xlu0 %214
    %216 = vadd.xlane.f32.xlu0 %v167
    %v217 = vpop.xlane.xlu0 %216
    %218 = vadd.xlane.f32.xlu0 %v172
    %v219 = vpop.xlane.xlu0 %218
    %220 = vadd.xlane.f32.xlu0 %v175
    %v221 = vpop.xlane.xlu0 %220
    %222 = vadd.xlane.f32.xlu0 %v180
    %v223 = vpop.xlane.xlu0 %222
    %224 = vadd.xlane.f32.xlu0 %v183
    %v225 = vpop.xlane.xlu0 %224
    %226 = vadd.xlane.f32.xlu0 %v188
    %v227 = vpop.xlane.xlu0 %226
    %228 = vadd.xlane.f32.xlu0 %v191
    %v229 = vpop.xlane.xlu0 %228
    %230 = vadd.xlane.f32.xlu0 %v196
    %v231 = vpop.xlane.xlu0 %230
    %232 = vadd.xlane.f32.xlu0 %v199
    %v233 = vpop.xlane.xlu0 %232
    %v234 = vmul.f32 %v203, 0.03125
    %v235 = vmul.f32 %v205, 0.03125
    %v236 = vmul.f32 %v207, 0.03125
    %v237 = vmul.f32 %v209, 0.03125
    %v238 = vmul.f32 %v211, 0.03125
    %v239 = vmul.f32 %v213, 0.03125
    %v240 = vmul.f32 %v215, 0.03125
    %v241 = vmul.f32 %v217, 0.03125
    %v242 = vmul.f32 %v219, 0.03125
    %v243 = vmul.f32 %v221, 0.03125
    %v244 = vmul.f32 %v223, 0.03125
    %v245 = vmul.f32 %v225, 0.03125
    %v246 = vmul.f32 %v227, 0.03125
    %v247 = vmul.f32 %v229, 0.03125
    %v248 = vmul.f32 %v231, 0.03125
    %v249 = vmul.f32 %v233, 0.03125
    %v250 = vlaneseq
    %v251 = vand.u32 %v250, 127
    %vm252 = vcmp.lt.s32.totalorder %v251, 32
    %v253 = vsub.f32 %v140, %v234
    %v254 = vsub.f32 %v143, %v235
    %v255 = vsub.f32 %v148, %v236
    %v256 = vsub.f32 %v151, %v237
    %v257 = vsub.f32 %v156, %v238
    %v258 = vsub.f32 %v159, %v239
    %v259 = vsub.f32 %v164, %v240
    %v260 = vsub.f32 %v167, %v241
    %v261 = vsub.f32 %v172, %v242
    %v262 = vsub.f32 %v175, %v243
    %v263 = vsub.f32 %v180, %v244
    %v264 = vsub.f32 %v183, %v245
    %v265 = vsub.f32 %v188, %v246
    %v266 = vsub.f32 %v191, %v247
    %v267 = vsub.f32 %v196, %v248
    %v268 = vsub.f32 %v199, %v249
    %v269 = vsel %vm252, %v253, 0.0
    %v270 = vsel %vm252, %v254, 0.0
    %v271 = vsel %vm252, %v255, 0.0
    %v272 = vsel %vm252, %v256, 0.0
    %v273 = vsel %vm252, %v257, 0.0
    %v274 = vsel %vm252, %v258, 0.0
    %v275 = vsel %vm252, %v259, 0.0
    %v276 = vsel %vm252, %v260, 0.0
    %v277 = vsel %vm252, %v261, 0.0
    %v278 = vsel %vm252, %v262, 0.0
    %v279 = vsel %vm252, %v263, 0.0
    %v280 = vsel %vm252, %v264, 0.0
    %v281 = vsel %vm252, %v265, 0.0
    %v282 = vsel %vm252, %v266, 0.0
    %v283 = vsel %vm252, %v267, 0.0
    %v284 = vsel %vm252, %v268, 0.0
    %v285 = vmul.f32 %v269, %v269
    %v286 = vmul.f32 %v270, %v270
    %v287 = vmul.f32 %v271, %v271
    %v288 = vmul.f32 %v272, %v272
    %v289 = vmul.f32 %v273, %v273
    %v290 = vmul.f32 %v274, %v274
    %v291 = vmul.f32 %v275, %v275
    %v292 = vmul.f32 %v276, %v276
    %v293 = vmul.f32 %v277, %v277
    %v294 = vmul.f32 %v278, %v278
    %v295 = vmul.f32 %v279, %v279
    %v296 = vmul.f32 %v280, %v280
    %v297 = vmul.f32 %v281, %v281
    %v298 = vmul.f32 %v282, %v282
    %v299 = vmul.f32 %v283, %v283
    %v300 = vmul.f32 %v284, %v284
    %301 = vadd.xlane.f32.xlu0 %v285
    %v302 = vpop.xlane.xlu0 %301
    %303 = vadd.xlane.f32.xlu0 %v286
    %v304 = vpop.xlane.xlu0 %303
    %305 = vadd.xlane.f32.xlu0 %v287
    %v306 = vpop.xlane.xlu0 %305
    %307 = vadd.xlane.f32.xlu0 %v288
    %v308 = vpop.xlane.xlu0 %307
    %309 = vadd.xlane.f32.xlu0 %v289
    %v310 = vpop.xlane.xlu0 %309
    %311 = vadd.xlane.f32.xlu0 %v290
    %v312 = vpop.xlane.xlu0 %311
    %313 = vadd.xlane.f32.xlu0 %v291
    %v314 = vpop.xlane.xlu0 %313
    %315 = vadd.xlane.f32.xlu0 %v292
    %v316 = vpop.xlane.xlu0 %315
    %317 = vadd.xlane.f32.xlu0 %v293
    %v318 = vpop.xlane.xlu0 %317
    %319 = vadd.xlane.f32.xlu0 %v294
    %v320 = vpop.xlane.xlu0 %319
    %321 = vadd.xlane.f32.xlu0 %v295
    %v322 = vpop.xlane.xlu0 %321
    %323 = vadd.xlane.f32.xlu0 %v296
    %v324 = vpop.xlane.xlu0 %323
    %325 = vadd.xlane.f32.xlu0 %v297
    %v326 = vpop.xlane.xlu0 %325
    %327 = vadd.xlane.f32.xlu0 %v298
    %v328 = vpop.xlane.xlu0 %327
    %329 = vadd.xlane.f32.xlu0 %v299
    %v330 = vpop.xlane.xlu0 %329
    %331 = vadd.xlane.f32.xlu0 %v300
    %v332 = vpop.xlane.xlu0 %331
    %v333 = vmul.f32 %v302, 0.03125
    %v334 = vmul.f32 %v304, 0.03125
    %v335 = vmul.f32 %v306, 0.03125
    %v336 = vmul.f32 %v308, 0.03125
    %v337 = vmul.f32 %v310, 0.03125
    %v338 = vmul.f32 %v312, 0.03125
    %v339 = vmul.f32 %v314, 0.03125
    %v340 = vmul.f32 %v316, 0.03125
    %v341 = vmul.f32 %v318, 0.03125
    %v342 = vmul.f32 %v320, 0.03125
    %v343 = vmul.f32 %v322, 0.03125
    %v344 = vmul.f32 %v324, 0.03125
    %v345 = vmul.f32 %v326, 0.03125
    %v346 = vmul.f32 %v328, 0.03125
    %v347 = vmul.f32 %v330, 0.03125
    %v348 = vmul.f32 %v332, 0.03125
    %v349 = vadd.f32 %v333, 1e-05
    %v350 = vadd.f32 %v334, 1e-05
    %v351 = vadd.f32 %v335, 1e-05
    %v352 = vadd.f32 %v336, 1e-05
    %v353 = vadd.f32 %v337, 1e-05
    %v354 = vadd.f32 %v338, 1e-05
    %v355 = vadd.f32 %v339, 1e-05
    %v356 = vadd.f32 %v340, 1e-05
    %v357 = vadd.f32 %v341, 1e-05
    %v358 = vadd.f32 %v342, 1e-05
    %v359 = vadd.f32 %v343, 1e-05
    %v360 = vadd.f32 %v344, 1e-05
    %v361 = vadd.f32 %v345, 1e-05
    %v362 = vadd.f32 %v346, 1e-05
    %v363 = vadd.f32 %v347, 1e-05
    %v364 = vadd.f32 %v348, 1e-05
    %v365 = vrsqrt.pop %v349
    %v366 = vrsqrt.pop %v350
    %v367 = vrsqrt.pop %v351
    %v368 = vrsqrt.pop %v352
    %v369 = vrsqrt.pop %v353
    %v370 = vrsqrt.pop %v354
    %v371 = vrsqrt.pop %v355
    %v372 = vrsqrt.pop %v356
    %v373 = vrsqrt.pop %v357
    %v374 = vrsqrt.pop %v358
    %v375 = vrsqrt.pop %v359
    %v376 = vrsqrt.pop %v360
    %v377 = vrsqrt.pop %v361
    %v378 = vrsqrt.pop %v362
    %v379 = vrsqrt.pop %v363
    %v380 = vrsqrt.pop %v364
    %v381 = vmul.f32 %v269, %v365
    %v382 = vmul.f32 %v270, %v366
    %v383 = vmul.f32 %v271, %v367
    %v384 = vmul.f32 %v272, %v368
    %v385 = vmul.f32 %v273, %v369
    %v386 = vmul.f32 %v274, %v370
    %v387 = vmul.f32 %v275, %v371
    %v388 = vmul.f32 %v276, %v372
    %v389 = vmul.f32 %v277, %v373
    %v390 = vmul.f32 %v278, %v374
    %v391 = vmul.f32 %v279, %v375
    %v392 = vmul.f32 %v280, %v376
    %v393 = vmul.f32 %v281, %v377
    %v394 = vmul.f32 %v282, %v378
    %v395 = vmul.f32 %v283, %v379
    %v396 = vmul.f32 %v284, %v380
    %v397 = vld [vmem:[%s3] sm:$0x1]
    %v399 = vlaneseq
    %v400 = vshrl.u32 %v399, 7
    %v401 = vsub.s32 0, %v400
    %v402 = vrot.slane %v397, %v401
    %v404 = vmul.f32 %v381, %v402
    %v405 = vmul.f32 %v382, %v402
    %v406 = vmul.f32 %v383, %v402
    %v407 = vmul.f32 %v384, %v402
    %v408 = vmul.f32 %v385, %v402
    %v409 = vmul.f32 %v386, %v402
    %v410 = vmul.f32 %v387, %v402
    %v411 = vmul.f32 %v388, %v402
    %v412 = vmul.f32 %v389, %v402
    %v413 = vmul.f32 %v390, %v402
    %v414 = vmul.f32 %v391, %v402
    %v415 = vmul.f32 %v392, %v402
    %v416 = vmul.f32 %v393, %v402
    %v417 = vmul.f32 %v394, %v402
    %v418 = vmul.f32 %v395, %v402
    %v419 = vmul.f32 %v396, %v402
    %v420 = vld [vmem:[%s4] sm:$0x1]
    %v422 = vlaneseq
    %v423 = vshrl.u32 %v422, 7
    %v424 = vsub.s32 0, %v423
    %v425 = vrot.slane %v420, %v424
    %v427 = vadd.f32 %v404, %v425
    %v428 = vadd.f32 %v405, %v425
    %v429 = vadd.f32 %v406, %v425
    %v430 = vadd.f32 %v407, %v425
    %v431 = vadd.f32 %v408, %v425
    %v432 = vadd.f32 %v409, %v425
    %v433 = vadd.f32 %v410, %v425
    %v434 = vadd.f32 %v411, %v425
    %v435 = vadd.f32 %v412, %v425
    %v436 = vadd.f32 %v413, %v425
    %v437 = vadd.f32 %v414, %v425
    %v438 = vadd.f32 %v415, %v425
    %v439 = vadd.f32 %v416, %v425
    %v440 = vadd.f32 %v417, %v425
    %v441 = vadd.f32 %v418, %v425
    %v442 = vadd.f32 %v419, %v425
    %443 = vst [vmem:[#allocation7] sm:$0xff] %v427
    %444 = vst [vmem:[#allocation7 + $0x8] sm:$0xff] %v428
    %445 = vst [vmem:[#allocation7 + $0x10] sm:$0xff] %v429
    %446 = vst [vmem:[#allocation7 + $0x18] sm:$0xff] %v430
    %447 = vst [vmem:[#allocation7 + $0x20] sm:$0xff] %v431
    %448 = vst [vmem:[#allocation7 + $0x28] sm:$0xff] %v432
    %449 = vst [vmem:[#allocation7 + $0x30] sm:$0xff] %v433
    %450 = vst [vmem:[#allocation7 + $0x38] sm:$0xff] %v434
    %451 = vst [vmem:[#allocation7 + $0x40] sm:$0xff] %v435
    %452 = vst [vmem:[#allocation7 + $0x48] sm:$0xff] %v436
    %453 = vst [vmem:[#allocation7 + $0x50] sm:$0xff] %v437
    %454 = vst [vmem:[#allocation7 + $0x58] sm:$0xff] %v438
    %455 = vst [vmem:[#allocation7 + $0x60] sm:$0xff] %v439
    %456 = vst [vmem:[#allocation7 + $0x68] sm:$0xff] %v440
    %457 = vst [vmem:[#allocation7 + $0x70] sm:$0xff] %v441
    %458 = vst [vmem:[#allocation7 + $0x78] sm:$0xff] %v442
    // Predicated region
    $region30: #{tpu_custom_call.1} parent=1 // pred_check
      _
    $region31: #{tpu_custom_call.1} parent=1 // pred_check_branch
      %460 = sbr.rel (0) target = $region33
    $region32: #{tpu_custom_call.1} parent=1 // pred_region
      %s462 = ssub.s32 2048, 2048
      %463 = vsyncadd [#allocation4], %s462
      %s464 = sshll.u32 [#allocation7], 4
      %s465 = int_to_ptr.vmem [resolvable:$true] %s464
      %470 = dma.vmem_to_hbm [thread:$0]  %s465, 2048, %s5, [#allocation4], 128, 128, 8
    $region33: #{tpu_custom_call.1} parent=1 // pred_fallthru
      _
    // Predicated region
    $region34: #{tpu_custom_call.1} parent=1 // pred_check
      _
    $region35: #{tpu_custom_call.1} parent=1 // pred_check_branch
      %472 = sbr.rel (0) target = $region37
    $region36: #{tpu_custom_call.1} parent=1 // pred_region
      %473 = dma.done [#allocation4], 2048
    $region37: #{tpu_custom_call.1} parent=1 // pred_fallthru
      _
    %474 = vsyncpa [#allocation3], 1
    %475 = vsyncpa [#allocation6], 1
    %476 = vsyncpa [#allocation4], 1

</llo_original>
